<compile_context>
chip_gen: v7x
topology: tpu7x:2x2x1
jax: 0.10.0
libtpu: 0.0.40
codegen_flags: <defaults>
</compile_context>

<pallas_src>
import functools

import jax
import jax.numpy as jnp
from jax import lax
from jax.experimental import pallas as pl
from jax.experimental.pallas import tpu as pltpu


def _static_pow(x, gamma):
    """Integer-gamma fast path: multiply chain (VPU) instead of pow (EUP)."""
    g = float(gamma)
    if g == 0.0:
        return jnp.ones_like(x)
    if g.is_integer() and 1 <= int(g) <= 16:
        k = int(g)
        result = None
        base = x
        while k:
            if k & 1:
                result = base if result is None else result * base
            k >>= 1
            if k:
                base = base * base
        return result
    # Non-integer gamma: exp/log pow on the EUP.
    return jnp.power(x, g)


def _focal_loss_kernel(logits_ref, side_ref, out_ref, *, gamma, n_valid, tile_n):
    i = pl.program_id(0)

    x = logits_ref[...].astype(jnp.float32)                 # [tile_n, C]
    side = side_ref[...]                                     # [tile_n, 2] int32
    t = side[:, 0:1]                                         # [tile_n, 1] int32
    alpha = pltpu.bitcast(side[:, 1:2], jnp.float32)         # [tile_n, 1] f32

    # Numerically-stable log-softmax pieces; log_probs never materialized.
    m = jnp.max(x, axis=1, keepdims=True)                    # [tile_n, 1]
    shifted = x - m                                          # [tile_n, C]
    # TODO(synk): for very large C, offload this row-sum to the idle MXU
    # (dot(exp(shifted), ones)) and/or add a C-tiled online-logsumexp path.
    lse = jnp.log(jnp.sum(jnp.exp(shifted), axis=1, keepdims=True))

    # One-hot gather of log p(target) along the class (lane) axis.
    col_ids = lax.broadcasted_iota(jnp.int32, x.shape, 1)
    onehot = col_ids == t                                     # [tile_n, C]
    logp_t = jnp.sum(jnp.where(onehot, shifted, 0.0), axis=1, keepdims=True) - lse

    p_t = jnp.exp(logp_t)                                     # [tile_n, 1]
    base = jnp.maximum(1.0 - p_t, 0.0)                        # clamp rounding > 1
    focal = _static_pow(base, gamma)                          # VPU multiply chain
    loss = -(focal * alpha) * logp_t                          # [tile_n, 1]

    last = pl.num_programs(0) - 1

    def _write(vals):
        part = jnp.sum(vals, axis=0, keepdims=True)           # (1, 1)
        out_ref[...] = jnp.broadcast_to(part.reshape(1, 1, 1), out_ref.shape)

    @pl.when(i < last)
    def _full_tile():
        _write(loss)

    @pl.when(i == last)
    def _ragged_tile():
        # Mask rows past the true N (garbage from the partial last block).
        row_ids = lax.broadcasted_iota(jnp.int32, (tile_n, 1), 0) + i * tile_n
        _write(jnp.where(row_ids < n_valid, loss, 0.0))


def _vmem_capacity_bytes():
    """Physical VMEM per core; conservative (v7x) default if undetectable."""
    try:
        cap = int(pltpu.get_tpu_info().vmem_capacity_bytes)
        if cap > 0:
            return cap
    except Exception:
        pass
    return 64 * 1024 * 1024


def focal_loss(logits, target, class_weights=None, *, gamma=2.0, reduction="mean"):
    """Pallas focal loss.

    logits:        [N, C] float (f32 or bf16; cast to f32 inside the kernel)
    target:        [N]    int
    class_weights: [C]    float or None
    reduction:     'mean' or 'sum'
    returns:       scalar float32
    """
    # TODO(synk): reduction='none' (per-sample loss output) not implemented.
    if reduction not in ("mean", "sum"):
        raise NotImplementedError("only 'mean' and 'sum' reductions supported")

    n, c = logits.shape
    target = target.astype(jnp.int32)

    # Host-side O(N) gather of the per-row class weight; folded together with
    # the target index into one lane-contiguous [N, 2] int32 side input
    # (alpha bit-cast to int32 here, bit-cast back inside the kernel).
    if class_weights is None:
        alpha = jnp.ones((n,), jnp.float32)
    else:
        alpha = class_weights.astype(jnp.float32)[target]
    side = jnp.concatenate(
        [target[:, None], lax.bitcast_convert_type(alpha, jnp.int32)[:, None]],
        axis=1)                                              # [N, 2] int32

    # ---- tile sizing -------------------------------------------------------
    # Generation-aware VMEM budget: ~48 MiB on v7x (64 MiB physical),
    # ~96 MiB on v5e/v6e (128 MiB physical).
    vmem_cap = _vmem_capacity_bytes()
    vmem_limit = max(16 * 1024 * 1024, min((vmem_cap * 3) // 4, 96 * 1024 * 1024))

    itemsize = jnp.dtype(logits.dtype).itemsize
    c_lane = ((c + 127) // 128) * 128         # VMEM lane padding of the C dim
    per_row_vmem = (2 * c_lane * itemsize     # double-buffered logits tile
                    + 5 * c_lane * 4          # in-kernel f32 temporaries
                    + 2 * 128 * 4)            # double-buffered [tile_n, 2] side
    budget = (vmem_limit * 13) // 20          # ~65% of the limit for headroom
    tile_n = budget // per_row_vmem
    tile_n = max(8, min(int(tile_n), 32768))
    tile_n = min(tile_n, max(8, (n // 8) * 8))   # never bigger than the problem
    tile_n = max(8, (tile_n // 8) * 8)
    num_tiles = pl.cdiv(n, tile_n)

    kernel = functools.partial(_focal_loss_kernel, gamma=gamma, n_valid=n,
                               tile_n=tile_n)

    partials = pl.pallas_call(
        kernel,
        grid=(num_tiles,),
        out_shape=jax.ShapeDtypeStruct((num_tiles, 1, 128), jnp.float32),
        in_specs=[
            pl.BlockSpec((tile_n, c), lambda i: (i, 0)),     # logits row tile
            pl.BlockSpec((tile_n, 2), lambda i: (i, 0)),     # target + alpha
        ],
        out_specs=pl.BlockSpec((1, 1, 128), lambda i: (i, 0, 0)),
        compiler_params=pltpu.CompilerParams(
            dimension_semantics=("parallel",),               # 2-TC friendly
            vmem_limit_bytes=int(vmem_limit)),
    )(logits, side)

    total = jnp.sum(partials[:, 0, 0])                        # tree-summed in JAX
    if reduction == "mean":
        total = total / jnp.float32(n)
    return total


def focal_loss_ref(logits, target, class_weights=None, *, gamma=2.0, reduction="mean"):
    """Pure-JAX reference mirroring the PyTorch module."""
    log_probs = jax.nn.log_softmax(logits.astype(jnp.float32), axis=1)
    probs = jnp.exp(log_probs)
    tp = jnp.take_along_axis(probs, target[:, None], axis=1)
    fw = (1.0 - tp) ** gamma
    if class_weights is not None:
        fw = fw * class_weights[target][:, None]
    loss = -fw * jnp.take_along_axis(log_probs, target[:, None], axis=1)
    if reduction == "mean":
        return jnp.mean(loss)
    return jnp.sum(loss)


if __name__ == "__main__":
    key = jax.random.PRNGKey(0)
    k1, k2, k3, k4 = jax.random.split(key, 4)

    # Small shapes consistent with the module: logits [N, C], target [N].
    N, C = 8, 16
    logits = jax.random.normal(k1, (N, C), dtype=jnp.float32)
    target = jax.random.randint(k2, (N,), 0, C, dtype=jnp.int32)
    class_weights = jnp.linspace(0.5, 1.5, C, dtype=jnp.float32)

    out = focal_loss(logits, target, class_weights, gamma=2.0, reduction="mean")
    out = jax.block_until_ready(out)
    ref = focal_loss_ref(logits, target, class_weights, gamma=2.0, reduction="mean")
    assert jnp.allclose(out, ref, rtol=1e-5, atol=1e-5), (out, ref)

    # Ragged shapes (N not a multiple of the tile, C not a multiple of 128)
    # exercise the padding-free last-tile masking + multi-tile partial-sum
    # path; 'sum' and class_weights=None cover the remaining module options.
    N2, C2 = 13, 20
    logits2 = jax.random.normal(k3, (N2, C2), dtype=jnp.float32)
    target2 = jax.random.randint(k4, (N2,), 0, C2, dtype=jnp.int32)

    out2 = focal_loss(logits2, target2, None, gamma=2.0, reduction="sum")
    out2 = jax.block_until_ready(out2)
    ref2 = focal_loss_ref(logits2, target2, None, gamma=2.0, reduction="sum")
    assert jnp.allclose(out2, ref2, rtol=1e-5, atol=1e-5), (out2, ref2)

    print("KERNEL_OK")
</pallas_src>

<mosaic_0001>
module attributes {stable_mosaic.version = 11 : i64} {
  func.func @_focal_loss_kernel(%arg0: i32, %arg1: memref<8x16xf32, #tpu.memory_space<vmem>>, %arg2: memref<8x2xi32, #tpu.memory_space<vmem>>, %arg3: memref<1x1x128xf32, #tpu.memory_space<vmem>>) attributes {dimension_semantics = [#tpu.dimension_semantics<parallel>], iteration_bounds = array<i64: 1>, scalar_prefetch = 0 : i64, scratch_operands = 0 : i64, tpu.core_type = #tpu.core_type<tc>, window_params = [{transform_indices = @transform_0, window_bounds = array<i64: 8, 16>}, {transform_indices = @transform_1, window_bounds = array<i64: 8, 2>}, {transform_indices = @transform_2, window_bounds = array<i64: 1, 1, 128>}]} {
    %c0 = arith.constant 0 : index
    %c0_0 = arith.constant 0 : index
    %0 = vector.load %arg1[%c0, %c0_0] : memref<8x16xf32, #tpu.memory_space<vmem>>, vector<8x16xf32>
    %c0_1 = arith.constant 0 : index
    %c0_2 = arith.constant 0 : index
    %1 = vector.load %arg2[%c0_1, %c0_2] : memref<8x2xi32, #tpu.memory_space<vmem>>, vector<8x2xi32>
    %2 = vector.extract_strided_slice %1 {offsets = [0, 0], sizes = [8, 1], strides = [1, 1]} : vector<8x2xi32> to vector<8x1xi32>
    %3 = vector.extract_strided_slice %1 {offsets = [0, 1], sizes = [8, 1], strides = [1, 1]} : vector<8x2xi32> to vector<8x1xi32>
    %4 = tpu.bitcast %3 : vector<8x1xi32> -> vector<8x1xf32>
    %cst = arith.constant dense<0xFF800000> : vector<8xf32>
    %5 = vector.multi_reduction <maximumf>, %0, %cst [1] : vector<8x16xf32> to vector<8xf32>
    %6 = vector.shape_cast %5 : vector<8xf32> to vector<8x1xf32>
    %7 = vector.broadcast %6 : vector<8x1xf32> to vector<8x16xf32>
    %8 = arith.subf %0, %7 : vector<8x16xf32>
    %9 = math.exp %8 : vector<8x16xf32>
    %cst_3 = arith.constant dense<0.000000e+00> : vector<8xf32>
    %10 = vector.multi_reduction <add>, %9, %cst_3 [1] : vector<8x16xf32> to vector<8xf32>
    %11 = vector.shape_cast %10 : vector<8xf32> to vector<8x1xf32>
    %12 = math.log %11 : vector<8x1xf32>
    %13 = tpu.iota {dimensions = array<i32: 1>} : vector<8x16xi32>
    %14 = vector.broadcast %2 : vector<8x1xi32> to vector<8x16xi32>
    %15 = arith.cmpi eq, %13, %14 : vector<8x16xi32>
    %cst_4 = arith.constant 0.000000e+00 : f32
    %16 = vector.broadcast %cst_4 : f32 to vector<8x16xf32>
    %17 = arith.select %15, %8, %16 : vector<8x16xi1>, vector<8x16xf32>
    %cst_5 = arith.constant dense<0.000000e+00> : vector<8xf32>
    %18 = vector.multi_reduction <add>, %17, %cst_5 [1] : vector<8x16xf32> to vector<8xf32>
    %19 = vector.shape_cast %18 : vector<8xf32> to vector<8x1xf32>
    %20 = arith.subf %19, %12 : vector<8x1xf32>
    %21 = math.exp %20 : vector<8x1xf32>
    %cst_6 = arith.constant 1.000000e+00 : f32
    %22 = vector.broadcast %cst_6 : f32 to vector<8x1xf32>
    %23 = arith.subf %22, %21 : vector<8x1xf32>
    %cst_7 = arith.constant 0.000000e+00 : f32
    %24 = vector.broadcast %cst_7 : f32 to vector<8x1xf32>
    %25 = arith.maximumf %23, %24 : vector<8x1xf32>
    %26 = arith.mulf %25, %25 : vector<8x1xf32>
    %27 = arith.mulf %26, %4 : vector<8x1xf32>
    %cst_8 = arith.constant 0.000000e+00 : f32
    %28 = vector.broadcast %cst_8 : f32 to vector<8x1xf32>
    %29 = arith.subf %28, %27 : vector<8x1xf32>
    %30 = arith.mulf %29, %20 : vector<8x1xf32>
    %c0_i32 = arith.constant 0 : i32
    %31 = arith.cmpi slt, %arg0, %c0_i32 : i32
    %32 = arith.extui %31 : i1 to i32
    %c0_i32_9 = arith.constant 0 : i32
    %33 = arith.cmpi ne, %32, %c0_i32_9 : i32
    scf.if %33 {
      %cst_12 = arith.constant dense<0.000000e+00> : vector<1xf32>
      %37 = vector.multi_reduction <add>, %30, %cst_12 [0] : vector<8x1xf32> to vector<1xf32>
      %38 = vector.shape_cast %37 : vector<1xf32> to vector<1x1xf32>
      %39 = vector.shape_cast %38 : vector<1x1xf32> to vector<1x1x1xf32>
      %40 = vector.shape_cast %39 : vector<1x1x1xf32> to vector<1x1x1xf32>
      %41 = vector.broadcast %40 : vector<1x1x1xf32> to vector<1x1x128xf32>
      %c0_13 = arith.constant 0 : index
      %c0_14 = arith.constant 0 : index
      %c0_15 = arith.constant 0 : index
      %42 = vector.load %arg3[%c0_13, %c0_14, %c0_15] : memref<1x1x128xf32, #tpu.memory_space<vmem>>, vector<1x1x128xf32>
      tpu.vector_store %arg3[%c0_13, %c0_14, %c0_15], %41 {strides = array<i32>} : memref<1x1x128xf32, #tpu.memory_space<vmem>>, vector<1x1x128xf32>,
    } else {
    }
    %c0_i32_10 = arith.constant 0 : i32
    %34 = arith.cmpi eq, %arg0, %c0_i32_10 : i32
    %35 = arith.extui %34 : i1 to i32
    %c0_i32_11 = arith.constant 0 : i32
    %36 = arith.cmpi ne, %35, %c0_i32_11 : i32
    scf.if %36 {
      %37 = tpu.iota {dimensions = array<i32: 0>} : vector<8x1xi32>
      %c8_i32 = arith.constant 8 : i32
      %38 = arith.muli %arg0, %c8_i32 : i32
      %39 = vector.broadcast %38 : i32 to vector<8x1xi32>
      %40 = arith.addi %37, %39 : vector<8x1xi32>
      %c8_i32_12 = arith.constant 8 : i32
      %41 = vector.broadcast %c8_i32_12 : i32 to vector<8x1xi32>
      %42 = arith.cmpi slt, %40, %41 : vector<8x1xi32>
      %cst_13 = arith.constant 0.000000e+00 : f32
      %43 = vector.broadcast %cst_13 : f32 to vector<8x1xf32>
      %44 = arith.select %42, %30, %43 : vector<8x1xi1>, vector<8x1xf32>
      %cst_14 = arith.constant dense<0.000000e+00> : vector<1xf32>
      %45 = vector.multi_reduction <add>, %44, %cst_14 [0] : vector<8x1xf32> to vector<1xf32>
      %46 = vector.shape_cast %45 : vector<1xf32> to vector<1x1xf32>
      %47 = vector.shape_cast %46 : vector<1x1xf32> to vector<1x1x1xf32>
      %48 = vector.shape_cast %47 : vector<1x1x1xf32> to vector<1x1x1xf32>
      %49 = vector.broadcast %48 : vector<1x1x1xf32> to vector<1x1x128xf32>
      %c0_15 = arith.constant 0 : index
      %c0_16 = arith.constant 0 : index
      %c0_17 = arith.constant 0 : index
      %50 = vector.load %arg3[%c0_15, %c0_16, %c0_17] : memref<1x1x128xf32, #tpu.memory_space<vmem>>, vector<1x1x128xf32>
      tpu.vector_store %arg3[%c0_15, %c0_16, %c0_17], %49 {strides = array<i32>} : memref<1x1x128xf32, #tpu.memory_space<vmem>>, vector<1x1x128xf32>,
    } else {
    }
    return
  }
  func.func @transform_0(%arg0: i32) -> (i32, i32) {
    %c0_i32 = arith.constant 0 : i32
    %c0_i32_0 = arith.constant 0 : i32
    return %arg0, %c0_i32 : i32, i32
  }
  func.func @transform_1(%arg0: i32) -> (i32, i32) {
    %c0_i32 = arith.constant 0 : i32
    %c0_i32_0 = arith.constant 0 : i32
    return %arg0, %c0_i32 : i32, i32
  }
  func.func @transform_2(%arg0: i32) -> (i32, i32, i32) {
    %c0_i32 = arith.constant 0 : i32
    %c0_i32_0 = arith.constant 0 : i32
    %c0_i32_1 = arith.constant 0 : i32
    return %arg0, %c0_i32, %c0_i32_0 : i32, i32, i32
  }
}

</mosaic_0001>

<llo_original>
// kernel: tpu_custom_call.1
$region0: #{tpu_custom_call.1}
  #allocation0 [shape = 'u32[]', space=smem, size = 0x4, offset = 0x4, fixed_abs, tag = 'smem constant byte address 0x4 - core index']
  #allocation1 [shape = 'u32[144,128]{1,0:T(1,128)}', space=vmem, size = 0x12000, scoped, tag = 'internal scratch']
  %s0 = inlined_call_operand.vmem [shape: f32[8,16], index: 0, kind: input, shape index: {}]
  %s1 = inlined_call_operand.vmem [shape: s32[8,2], index: 1, kind: input, shape index: {}]
  %s2 = inlined_call_operand.hbm [shape: f32[1,1,128], index: 2, kind: output, shape index: {}]
  %s3 = sld [smem:[#allocation0]]
  $region26: #{tpu_custom_call.1} parent=0
    _
  %s5 = ssub.s32 1, %s3
  %s6 = scalar_select 0, %s5, %s3
  $region1: #{tpu_custom_call.1} parent=0
    #allocation2 [shape = 'u8[512]{0}', space=vmem, size = 0x400, scoped, tag = 'output window, operand 0, single buffered']
    #allocation3 [shape = 's32[1]{0}', space=sflag, size = 0x4, scoped, tag = 'scoped memory for tpu_custom_call.1']
    %7 = vsyncpa [#allocation3], 0
    // Predicated region
    $region2: #{tpu_custom_call.1} parent=1 // pred_check
      _
    $region3: #{tpu_custom_call.1} parent=1 // pred_check_branch
      %9 = sbr.rel (0) target = $region5
    $region4: #{tpu_custom_call.1} parent=1 // pred_region
      _
    $region5: #{tpu_custom_call.1} parent=1 // pred_fallthru
      _
    // Predicated region
    $region6: #{tpu_custom_call.1} parent=1 // pred_check
      _
    $region7: #{tpu_custom_call.1} parent=1 // pred_check_branch
      %11 = sbr.rel (0) target = $region9
    $region8: #{tpu_custom_call.1} parent=1 // pred_region
      _
    $region9: #{tpu_custom_call.1} parent=1 // pred_fallthru
      _
    %v12 = vld [vmem:[%s0] sm:$0xff]
    %v13 = vld [vmem:[%s1] sm:$0xff]
    %vm15 = vcmask 130048
    %v16 = vsel %vm15, %v12, -inf
    %17 = vmax.xlane.f32.xlu0 %v16
    %v18 = vpop.xlane.xlu0 %17
    %v19 = vsub.f32 %v12, %v18
    %v20 = vmul.f32 %v19, 1.442695
    %v21 = vpow.pop %v20
    %v22 = vsel %vm15, %v21, 0.0
    %23 = vadd.xlane.f32.xlu0 %v22
    %v24 = vpop.xlane.xlu0 %23
    %v25 = vlog2.pop %v24
    %v26 = vmul.f32 %v25, 0.6931472
    %v27 = vlaneseq
    %v28 = vand.u32 %v27, 127
    %29 = vset.pattern.permute.xlu0 0
    %30 = vperm.xlu0 %29, %v13
    %v31 = vpop.permute.xlu0 %30
    %vm32 = vcmp.eq.s32.totalorder %v28, %v31
    %v33 = vsel %vm32, %v19, 0.0
    %v34 = vsel %vm15, %v33, 0.0
    %35 = vadd.xlane.f32.xlu0 %v34
    %v36 = vpop.xlane.xlu0 %35
    %v37 = vsub.f32 %v36, %v26
    %v38 = vmul.f32 %v37, 1.442695
    %v39 = vpow.pop %v38
    %v40 = vsub.f32 1.0, %v39
    %v41 = vmax.f32 %v40, 0.0
    %v42 = vmul.f32 %v41, %v41
    %v43 = vmul.f32 %v42, %v13
    %v44 = vsub.f32 0.0, %v43
    %v45 = vmul.f32 %v44, %v37
    %p46 = scmp.lt.s32.totalorder 0, 0
    // Predicated region
    $region10: #{tpu_custom_call.1} parent=1 // pred_check
      %p47 = pneg %p46
    $region11: #{tpu_custom_call.1} parent=1 // pred_check_branch
      %49 = sbr.rel (%p47) target = $region13
    $region12: #{tpu_custom_call.1} parent=1 // pred_region
      %vm50 = vcmask 15368
      %v51 = vsel %vm50, %v45, 0.0
      %v52 = vrot.slane %v51, 4
      %v53 = vadd.f32 %v51, %v52
      %v54 = vrot.slane %v53, 2
      %v55 = vadd.f32 %v53, %v54
      %v56 = vrot.slane %v55, 1
      %v57 = vadd.f32 %v55, %v56
      %59 = vset.pattern.permute.xlu0 1
      %60 = vperm.xlu0 %59, %v57
      %v61 = vpop.permute.xlu0 %60
      %63 = vst [vmem:[#allocation2] sm:$0x1] %v61
    $region13: #{tpu_custom_call.1} parent=1 // pred_fallthru
      _
    %p64 = scmp.eq.s32.totalorder 0, 0
    // Predicated region
    $region14: #{tpu_custom_call.1} parent=1 // pred_check
      %p65 = pneg %p64
    $region15: #{tpu_custom_call.1} parent=1 // pred_check_branch
      %67 = sbr.rel (%p65) target = $region17
    $region16: #{tpu_custom_call.1} parent=1 // pred_region
      %v68 = vlaneseq
      %v69 = vshrl.u32 %v68, 7
      %s70 = smul.u32 0, 8
      %v71 = vstv %s70
      %v72 = vadd.s32 %v69, %v71
      %vm73 = vcmp.lt.s32.totalorder %v72, 8
      %v74 = vsel %vm73, %v45, 0.0
      %vm75 = vcmask 15368
      %v76 = vsel %vm75, %v74, 0.0
      %v77 = vrot.slane %v76, 4
      %v78 = vadd.f32 %v76, %v77
      %v79 = vrot.slane %v78, 2
      %v80 = vadd.f32 %v78, %v79
      %v81 = vrot.slane %v80, 1
      %v82 = vadd.f32 %v80, %v81
      %84 = vset.pattern.permute.xlu0 1
      %85 = vperm.xlu0 %84, %v82
      %v86 = vpop.permute.xlu0 %85
      %88 = vst [vmem:[#allocation2] sm:$0x1] %v86
    $region17: #{tpu_custom_call.1} parent=1 // pred_fallthru
      _
    // Predicated region
    $region18: #{tpu_custom_call.1} parent=1 // pred_check
      _
    $region19: #{tpu_custom_call.1} parent=1 // pred_check_branch
      %90 = sbr.rel (0) target = $region21
    $region20: #{tpu_custom_call.1} parent=1 // pred_region
      %s92 = ssub.s32 16, 16
      %93 = vsyncadd [#allocation3], %s92
      %s95 = sshll.u32 [#allocation2], 4
      %s96 = int_to_ptr.vmem [resolvable:$true] %s95
      %98 = dma.vmem_to_hbm [thread:$0]  %s96, 16, %s2, [#allocation3]
    $region21: #{tpu_custom_call.1} parent=1 // pred_fallthru
      _
    // Predicated region
    $region22: #{tpu_custom_call.1} parent=1 // pred_check
      _
    $region23: #{tpu_custom_call.1} parent=1 // pred_check_branch
      %100 = sbr.rel (0) target = $region25
    $region24: #{tpu_custom_call.1} parent=1 // pred_region
      %101 = dma.done [#allocation3], 16
    $region25: #{tpu_custom_call.1} parent=1 // pred_fallthru
      _
    %102 = vsyncpa [#allocation3], 1

</llo_original>
